<compile_context>
chip_gen: v7x
topology: tpu7x:2x2x1
jax: 0.10.0
libtpu: 0.0.40
codegen_flags: <defaults>
</compile_context>

<pallas_src>
import math

import jax
import jax.numpy as jnp
from jax.experimental import pallas as pl
from jax.experimental.pallas import tpu as pltpu

_HALF_LOG_2PI = 0.5 * math.log(2.0 * math.pi)   # Python float -> literal in kernel


# ---------------------------------------------------------------------------
# Kernels
# ---------------------------------------------------------------------------
def _prior_logprob_kernel(z_ref, mean_ref, inv_std_ref, c_ref, out_ref):
    """out[b, 0] = -0.5 * sum_m ((z[b,m]-mean[m]) * inv_std[m])^2 + c
       with c = -sum_m log(std[m]) - M * 0.5*log(2*pi)  (precomputed, SMEM)."""
    z = z_ref[...].astype(jnp.float32)                    # (tb, M), cast in-kernel
    diff = (z - mean_ref[...]) * inv_std_ref[...]         # broadcast (1,M) over rows
    out_ref[...] = -0.5 * jnp.sum(diff * diff, axis=-1, keepdims=True) + c_ref[0]


def _prior_sample_kernel(eps_ref, mean_ref, std_ref, out_ref):
    """Reparameterized sample: z = mean + std * eps."""
    eps = eps_ref[...].astype(jnp.float32)
    out_ref[...] = (mean_ref[...] + std_ref[...] * eps).astype(out_ref.dtype)


# ---------------------------------------------------------------------------
# Tile-size selection
# ---------------------------------------------------------------------------
def _choose_tb(B, M, itemsize):
    """Pick a batch-tile size:
       - as large as possible (<= 1024 rows) to amortize the ~0.35us/step cost,
       - small enough that double-buffered in + out tiles stay far inside the
         default scoped-VMEM limit on v5e (16 MiB) / v6e / v7x (32 MiB),
       - a multiple of 8 (sublane granularity) that divides B,
       - prefers >= 2 grid steps so the 'parallel' axis can be core-sharded."""
    budget = 8 * 1024 * 1024                                  # conservative bytes
    max_rows = max(8, budget // (4 * max(M, 1) * itemsize))   # 2 bufs x (in + out)
    cap = min(1024, max_rows)
    if B > 8:
        cap = min(cap, max(8, (B // 2) // 8 * 8))             # prefer grid >= 2
    if B <= cap:
        return B
    c = (cap // 8) * 8
    while c >= 8:                       # largest multiple-of-8 divisor of B <= cap
        if B % c == 0:
            return c
        c -= 8
    # TODO(synk): ragged B with no multiple-of-8 divisor falls back to one tile.
    return B


# ---------------------------------------------------------------------------
# Wrappers
# ---------------------------------------------------------------------------
def gaussian_prior_log_prob(z, mean, std, *, tb=None):
    """log_prob of Independent(Normal(mean, std), 1) at z: (B, M) -> (B,)."""
    B, M = z.shape
    itemsize = jnp.dtype(z.dtype).itemsize
    if tb is None:
        tb = _choose_tb(B, M, itemsize)
    assert B % tb == 0, "batch must be divisible by the tile size"

    std32 = std.astype(jnp.float32)
    mean2 = mean.reshape(1, M).astype(jnp.float32)
    inv_std2 = (1.0 / std32).reshape(1, M)
    # Per-row additive constant, computed once (O(M) in the wrapper), SMEM input.
    c = (-jnp.sum(jnp.log(std32)) - M * _HALF_LOG_2PI).astype(jnp.float32).reshape(1)

    out = pl.pallas_call(
        _prior_logprob_kernel,
        out_shape=jax.ShapeDtypeStruct((B, 1), jnp.float32),
        grid_spec=pltpu.PrefetchScalarGridSpec(
            num_scalar_prefetch=0,
            grid=(B // tb,),
            in_specs=[
                pl.BlockSpec((tb, M), lambda i: (i, 0)),             # z tile (native)
                pl.BlockSpec((1, M), lambda i: (0, 0)),              # mean (f32)
                pl.BlockSpec((1, M), lambda i: (0, 0)),              # inv_std (f32)
                pl.BlockSpec(memory_space=pltpu.MemorySpace.SMEM),   # c scalar
            ],
            out_specs=pl.BlockSpec((tb, 1), lambda i: (i, 0)),
        ),
        compiler_params=pltpu.CompilerParams(
            dimension_semantics=("parallel",)),
        cost_estimate=pl.CostEstimate(
            flops=4 * B * M,
            transcendentals=0,
            bytes_accessed=B * M * itemsize + B * 4 + 2 * M * 4,
        ),
    )(z, mean2, inv_std2, c)
    return out[:, 0]


def gaussian_prior_rsample(eps, mean, std, *, tb=None):
    """Reparameterized prior sample given standard-normal eps: (B, M) -> (B, M)."""
    B, M = eps.shape
    itemsize = jnp.dtype(eps.dtype).itemsize
    if tb is None:
        tb = _choose_tb(B, M, itemsize)
    assert B % tb == 0, "batch must be divisible by the tile size"

    mean2 = mean.reshape(1, M).astype(jnp.float32)
    std2 = std.reshape(1, M).astype(jnp.float32)

    return pl.pallas_call(
        _prior_sample_kernel,
        out_shape=jax.ShapeDtypeStruct((B, M), eps.dtype),
        grid_spec=pltpu.PrefetchScalarGridSpec(
            num_scalar_prefetch=0,
            grid=(B // tb,),
            in_specs=[
                pl.BlockSpec((tb, M), lambda i: (i, 0)),      # eps tile (native)
                pl.BlockSpec((1, M), lambda i: (0, 0)),       # mean (f32)
                pl.BlockSpec((1, M), lambda i: (0, 0)),       # std (f32)
            ],
            out_specs=pl.BlockSpec((tb, M), lambda i: (i, 0)),
        ),
        compiler_params=pltpu.CompilerParams(
            dimension_semantics=("parallel",)),
        cost_estimate=pl.CostEstimate(
            flops=2 * B * M,
            transcendentals=0,
            bytes_accessed=2 * B * M * itemsize + 2 * M * 4,
        ),
    )(eps, mean2, std2)


class GaussianPrior:
    """JAX/Pallas port of the PyTorch GaussianPrior module."""

    def __init__(self, M):
        self.M = M
        # Deterministic param init matching nn.Parameter(torch.zeros/ones(M)).
        self.mean = jnp.zeros((M,), dtype=jnp.float32)
        self.std = jnp.ones((M,), dtype=jnp.float32)

    # PyTorch forward() returns a Distribution object; here we expose that
    # distribution's tensor compute surface, backed by Pallas kernels.
    def log_prob(self, z):
        return gaussian_prior_log_prob(z, self.mean, self.std)

    def rsample(self, eps):
        return gaussian_prior_rsample(eps, self.mean, self.std)


# ---------------------------------------------------------------------------
# Main
# ---------------------------------------------------------------------------
if __name__ == "__main__":
    M = 32   # latent dimension
    B = 16   # batch of latent samples (-> 2 grid steps with tb=8)

    key = jax.random.PRNGKey(0)
    kz, keps = jax.random.split(key)
    z = jax.random.normal(kz, (B, M), dtype=jnp.float32)
    eps = jax.random.normal(keps, (B, M), dtype=jnp.float32)

    prior = GaussianPrior(M)

    lp = prior.log_prob(z)
    smp = prior.rsample(eps)
    jax.block_until_ready(lp)
    jax.block_until_ready(smp)

    # Pure-JAX reference: td.Independent(td.Normal(mean, std), 1).log_prob(z)
    ref_lp = jnp.sum(
        -0.5 * ((z - prior.mean) / prior.std) ** 2
        - jnp.log(prior.std)
        - 0.5 * jnp.log(2.0 * jnp.pi),
        axis=-1,
    )
    ref_smp = prior.mean + prior.std * eps

    assert lp.shape == (B,)
    assert smp.shape == (B, M)
    assert jnp.allclose(lp, ref_lp, atol=1e-5, rtol=1e-5)
    assert jnp.allclose(smp, ref_smp, atol=1e-6, rtol=1e-6)

    print("KERNEL_OK")
</pallas_src>

<mosaic_0001>
module attributes {stable_mosaic.version = 11 : i64} {
  func.func @_prior_logprob_kernel(%arg0: i32, %arg1: memref<8x32xf32, #tpu.memory_space<vmem>>, %arg2: memref<1x32xf32, #tpu.memory_space<vmem>>, %arg3: memref<1x32xf32, #tpu.memory_space<vmem>>, %arg4: memref<1xf32, #tpu.memory_space<smem>>, %arg5: memref<8x1xf32, #tpu.memory_space<vmem>>) attributes {dimension_semantics = [#tpu.dimension_semantics<parallel>], iteration_bounds = array<i64: 2>, scalar_prefetch = 0 : i64, scratch_operands = 0 : i64, tpu.core_type = #tpu.core_type<tc>, window_params = [{transform_indices = @transform_0, window_bounds = array<i64: 8, 32>}, {pipeline_mode = #tpu.pipeline_mode<synchronous>, transform_indices = @transform_1, window_bounds = array<i64: 1, 32>}, {pipeline_mode = #tpu.pipeline_mode<synchronous>, transform_indices = @transform_2, window_bounds = array<i64: 1, 32>}, {transform_indices = @transform_3, window_bounds = array<i64: 1>}, {transform_indices = @transform_4, window_bounds = array<i64: 8, 1>}]} {
    %c0 = arith.constant 0 : index
    %c0_0 = arith.constant 0 : index
    %0 = vector.load %arg1[%c0, %c0_0] : memref<8x32xf32, #tpu.memory_space<vmem>>, vector<8x32xf32>
    %c0_1 = arith.constant 0 : index
    %c0_2 = arith.constant 0 : index
    %1 = vector.load %arg2[%c0_1, %c0_2] : memref<1x32xf32, #tpu.memory_space<vmem>>, vector<1x32xf32>
    %2 = vector.broadcast %1 : vector<1x32xf32> to vector<8x32xf32>
    %3 = arith.subf %0, %2 : vector<8x32xf32>
    %c0_3 = arith.constant 0 : index
    %c0_4 = arith.constant 0 : index
    %4 = vector.load %arg3[%c0_3, %c0_4] : memref<1x32xf32, #tpu.memory_space<vmem>>, vector<1x32xf32>
    %5 = vector.broadcast %4 : vector<1x32xf32> to vector<8x32xf32>
    %6 = arith.mulf %3, %5 : vector<8x32xf32>
    %7 = arith.mulf %6, %6 : vector<8x32xf32>
    %cst = arith.constant dense<0.000000e+00> : vector<8xf32>
    %8 = vector.multi_reduction <add>, %7, %cst [1] : vector<8x32xf32> to vector<8xf32>
    %9 = vector.shape_cast %8 : vector<8xf32> to vector<8x1xf32>
    %cst_5 = arith.constant -5.000000e-01 : f32
    %10 = vector.broadcast %cst_5 : f32 to vector<8x1xf32>
    %11 = arith.mulf %10, %9 : vector<8x1xf32>
    %c0_6 = arith.constant 0 : index
    %12 = memref.load %arg4[%c0_6] : memref<1xf32, #tpu.memory_space<smem>>
    %13 = vector.broadcast %12 : f32 to vector<8x1xf32>
    %14 = arith.addf %11, %13 : vector<8x1xf32>
    %c0_7 = arith.constant 0 : index
    %c0_8 = arith.constant 0 : index
    %15 = vector.load %arg5[%c0_7, %c0_8] : memref<8x1xf32, #tpu.memory_space<vmem>>, vector<8x1xf32>
    tpu.vector_store %arg5[%c0_7, %c0_8], %14 {strides = array<i32>} : memref<8x1xf32, #tpu.memory_space<vmem>>, vector<8x1xf32>,
    return
  }
  func.func @transform_0(%arg0: i32) -> (i32, i32) {
    %c0_i32 = arith.constant 0 : i32
    %c0_i32_0 = arith.constant 0 : i32
    return %arg0, %c0_i32 : i32, i32
  }
  func.func @transform_1(%arg0: i32) -> (i32, i32) {
    %c0_i32 = arith.constant 0 : i32
    %c0_i32_0 = arith.constant 0 : i32
    %c0_i32_1 = arith.constant 0 : i32
    return %c0_i32, %c0_i32_0 : i32, i32
  }
  func.func @transform_2(%arg0: i32) -> (i32, i32) {
    %c0_i32 = arith.constant 0 : i32
    %c0_i32_0 = arith.constant 0 : i32
    %c0_i32_1 = arith.constant 0 : i32
    return %c0_i32, %c0_i32_0 : i32, i32
  }
  func.func @transform_3(%arg0: i32) -> i32 {
    %c0_i32 = arith.constant 0 : i32
    %c0_i32_0 = arith.constant 0 : i32
    return %c0_i32 : i32
  }
  func.func @transform_4(%arg0: i32) -> (i32, i32) {
    %c0_i32 = arith.constant 0 : i32
    %c0_i32_0 = arith.constant 0 : i32
    return %arg0, %c0_i32 : i32, i32
  }
}

</mosaic_0001>

<llo_original>
// kernel: tpu_custom_call.1
$region0: #{tpu_custom_call.1}
  #allocation0 [shape = 'u32[]', space=smem, size = 0x4, offset = 0x4, fixed_abs, tag = 'smem constant byte address 0x4 - core index']
  #allocation1 [shape = 'u32[144,128]{1,0:T(1,128)}', space=vmem, size = 0x12000, scoped, tag = 'internal scratch']
  #allocation2 [shape = 'f32[1]{0:T(128)S(6)}', space=smem, size = 0x200, scoped, tag = 'scoped memory for tpu_custom_call.1']
  %s0 = inlined_call_operand.hbm [shape: f32[16,32], index: 0, kind: input, shape index: {}]
  %s1 = inlined_call_operand.vmem [shape: f32[1,32], index: 1, kind: input, shape index: {}]
  %s2 = inlined_call_operand.vmem [shape: f32[1,32], index: 2, kind: input, shape index: {}]
  %s3 = inlined_call_operand.<no memory space> [shape: f32[1], index: 3, kind: input, shape index: {}]
  %s4 = inlined_call_operand.vmem [shape: f32[16,1], index: 4, kind: output, shape index: {}]
  %s5 = sld [smem:[#allocation0]]
  $region53: #{tpu_custom_call.1} parent=0
    _
  %s7 = ssub.s32 1, %s5
  %s8 = scalar_select 0, %s7, %s5
  %9 = sst [smem:[#allocation2]] %s3
  $region1: #{tpu_custom_call.1} parent=0
    #allocation3 [shape = 'u8[8192]{0}', space=vmem, size = 0x2000, scoped, tag = 'input window, operand 0']
    #allocation4 [shape = 's32[2]{0}', space=sflag, size = 0x8, scoped, tag = 'scoped memory for tpu_custom_call.1']
    %10 = vsyncpa [#allocation4], 0
    %s11 = scalar_lea.sflag [#allocation4], 1
    %12 = vsyncpa %s11, 0
    loop: start=0, step=1, limit=4
    $region2: #{tpu_custom_call.1} parent=1 // loop_pre_header
      _
    $region3: #{tpu_custom_call.1} parent=1 // loop_header
      %s14 = sphi 0, %s18
      %p15 = scmp.ge.s32.totalorder %s14, 4
      %s24 = sphi 0, %s26
      %s27 = sphi 0, %s24
      %s28 = sphi 0, %s27
      %s44 = sphi 0, %s28
      %s48 = sphi 0, %s48
      %s50 = sphi 0, %s48
      %s51 = sphi 0, %s50
      %s65 = sphi 0, %s51
      %s69 = sphi 0, %s69
      %s71 = sphi 0, %s69
      %s72 = sphi 0, %s71
      %s86 = sphi 0, %s72
      %s90 = sphi 0, %s90
      %s92 = sphi 0, %s90
      %s93 = sphi 0, %s92
      %s107 = sphi 0, %s93
      %s113 = sphi 0, %s115
      %s116 = sphi 0, %s113
      %s117 = sphi 0, %s116
      %s133 = sphi 0, %s117
    $region4: #{tpu_custom_call.1} parent=1 // loop_header_branch
      %17 = sbr.rel (%p15) target = $region8
    $region5: #{tpu_custom_call.1} parent=1 // loop_body
      %s19 = ssub.s32 %s14, 1
      %s20 = ssub.s32 %s14, 2
      %s21 = sadd.s32 %s14, 1
      %s22 = ssub.s32 %s14, %s21
      %p23 = scmp.eq.s32.totalorder %s22, 0
      %s25 = sadd.s32 %s24, 1
      %s26 = scalar_select %p23, %s24, %s25
      %p29 = pneg %p23
      %p30 = scmp.eq.s32.totalorder %s14, 1
      %p31 = por %p29, %p30
      %p32 = scmp.ne.s32.totalorder %s24, %s27
      %p33 = scmp.eq.s32.totalorder %s14, 0
      %p34 = por %p32, %p33
      %p35 = scmp.ne.s32.totalorder %s24, %s27
      %p36 = scmp.eq.s32.totalorder %s19, 1
      %p37 = por %p35, %p36
      %p38 = scmp.ne.s32.totalorder %s27, %s28
      %p39 = scmp.eq.s32.totalorder %s19, 0
      %p40 = por %p38, %p39
      %p41 = scmp.ne.s32.totalorder %s27, %s28
      %p42 = scmp.eq.s32.totalorder %s20, 1
      %p43 = por %p41, %p42
      %p45 = scmp.ne.s32.totalorder %s28, %s44
      %p46 = scmp.eq.s32.totalorder %s20, 0
      %p47 = por %p45, %p46
      %s49 = sadd.s32 %s48, 1
      %p52 = scmp.eq.s32.totalorder %s14, 1
      %p53 = scmp.ne.s32.totalorder %s48, %s50
      %p54 = scmp.eq.s32.totalorder %s14, 0
      %p55 = por %p53, %p54
      %p56 = scmp.ne.s32.totalorder %s48, %s50
      %p57 = scmp.eq.s32.totalorder %s19, 1
      %p58 = por %p56, %p57
      %p59 = scmp.ne.s32.totalorder %s50, %s51
      %p60 = scmp.eq.s32.totalorder %s19, 0
      %p61 = por %p59, %p60
      %p62 = scmp.ne.s32.totalorder %s50, %s51
      %p63 = scmp.eq.s32.totalorder %s20, 1
      %p64 = por %p62, %p63
      %p66 = scmp.ne.s32.totalorder %s51, %s65
      %p67 = scmp.eq.s32.totalorder %s20, 0
      %p68 = por %p66, %p67
      %s70 = sadd.s32 %s69, 1
      %p73 = scmp.eq.s32.totalorder %s14, 1
      %p74 = scmp.ne.s32.totalorder %s69, %s71
      %p75 = scmp.eq.s32.totalorder %s14, 0
      %p76 = por %p74, %p75
      %p77 = scmp.ne.s32.totalorder %s69, %s71
      %p78 = scmp.eq.s32.totalorder %s19, 1
      %p79 = por %p77, %p78
      %p80 = scmp.ne.s32.totalorder %s71, %s72
      %p81 = scmp.eq.s32.totalorder %s19, 0
      %p82 = por %p80, %p81
      %p83 = scmp.ne.s32.totalorder %s71, %s72
      %p84 = scmp.eq.s32.totalorder %s20, 1
      %p85 = por %p83, %p84
      %p87 = scmp.ne.s32.totalorder %s72, %s86
      %p88 = scmp.eq.s32.totalorder %s20, 0
      %p89 = por %p87, %p88
      %s91 = sadd.s32 %s90, 1
      %p94 = scmp.eq.s32.totalorder %s14, 1
      %p95 = scmp.ne.s32.totalorder %s90, %s92
      %p96 = scmp.eq.s32.totalorder %s14, 0
      %p97 = por %p95, %p96
      %p98 = scmp.ne.s32.totalorder %s90, %s92
      %p99 = scmp.eq.s32.totalorder %s19, 1
      %p100 = por %p98, %p99
      %p101 = scmp.ne.s32.totalorder %s92, %s93
      %p102 = scmp.eq.s32.totalorder %s19, 0
      %p103 = por %p101, %p102
      %p104 = scmp.ne.s32.totalorder %s92, %s93
      %p105 = scmp.eq.s32.totalorder %s20, 1
      %p106 = por %p104, %p105
      %p108 = scmp.ne.s32.totalorder %s93, %s107
      %p109 = scmp.eq.s32.totalorder %s20, 0
      %p110 = por %p108, %p109
      %s111 = ssub.s32 %s14, %s21
      %p112 = scmp.eq.s32.totalorder %s111, 0
      %s114 = sadd.s32 %s113, 1
      %s115 = scalar_select %p112, %s113, %s114
      %p118 = pneg %p112
      %p119 = scmp.eq.s32.totalorder %s14, 1
      %p120 = por %p118, %p119
      %p121 = scmp.ne.s32.totalorder %s113, %s116
      %p122 = scmp.eq.s32.totalorder %s14, 0
      %p123 = por %p121, %p122
      %p124 = scmp.ne.s32.totalorder %s113, %s116
      %p125 = scmp.eq.s32.totalorder %s19, 1
      %p126 = por %p124, %p125
      %p127 = scmp.ne.s32.totalorder %s116, %s117
      %p128 = scmp.eq.s32.totalorder %s19, 0
      %p129 = por %p127, %p128
      %p130 = scmp.ne.s32.totalorder %s116, %s117
      %p131 = scmp.eq.s32.totalorder %s20, 1
      %p132 = por %p130, %p131
      %p134 = scmp.ne.s32.totalorder %s117, %s133
      %p135 = scmp.eq.s32.totalorder %s20, 0
      %p136 = por %p134, %p135
      %p137 = scmp.le.s32.totalorder 1, %s14
      %p138 = scmp.lt.s32.totalorder %s14, 3
      %p139 = pnand %p137, %p138
      %p140 = pneg %p139
      // Predicated region
      $region9: #{tpu_custom_call.1} parent=5 // pred_check
        _
      $region10: #{tpu_custom_call.1} parent=5 // pred_check_branch
        %142 = sbr.rel (%p139) target = $region12
      $region11: #{tpu_custom_call.1} parent=5 // pred_region
        %s143 = ssub.s32 %s14, 1
        // Predicated region
        $region13: #{tpu_custom_call.1} parent=11 // pred_check
          %p144 = pneg %p61
        $region14: #{tpu_custom_call.1} parent=11 // pred_check_branch
          %146 = sbr.rel (%p144) target = $region16
        $region15: #{tpu_custom_call.1} parent=11 // pred_region
          _
        $region16: #{tpu_custom_call.1} parent=11 // pred_fallthru
          _
        // Predicated region
        $region17: #{tpu_custom_call.1} parent=11 // pred_check
          %p147 = pneg %p82
        $region18: #{tpu_custom_call.1} parent=11 // pred_check_branch
          %149 = sbr.rel (%p147) target = $region20
        $region19: #{tpu_custom_call.1} parent=11 // pred_region
          _
        $region20: #{tpu_custom_call.1} parent=11 // pred_fallthru
          _
        // Predicated region
        $region21: #{tpu_custom_call.1} parent=11 // pred_check
          %p150 = pneg %p103
        $region22: #{tpu_custom_call.1} parent=11 // pred_check_branch
          %152 = sbr.rel (%p150) target = $region24
        $region23: #{tpu_custom_call.1} parent=11 // pred_region
          _
        $region24: #{tpu_custom_call.1} parent=11 // pred_fallthru
          _
      $region12: #{tpu_custom_call.1} parent=5 // pred_fallthru
        _
      %p153 = scmp.lt.s32.totalorder %s14, 2
      // Predicated region
      $region25: #{tpu_custom_call.1} parent=5 // pred_check
        %p154 = pneg %p153
      $region26: #{tpu_custom_call.1} parent=5 // pred_check_branch
        %156 = sbr.rel (%p154) target = $region28
      $region27: #{tpu_custom_call.1} parent=5 // pred_region
        // Predicated region
        $region29: #{tpu_custom_call.1} parent=27 // pred_check
          %p157 = pneg %p34
        $region30: #{tpu_custom_call.1} parent=27 // pred_check_branch
          %159 = sbr.rel (%p157) target = $region32
        $region31: #{tpu_custom_call.1} parent=27 // pred_region
          %s160 = sand.u32 %s24, 1
          %s161 = scalar_lea.sflag [#allocation4], %s160
          %s162 = sand.u32 %s24, 1
          %s163 = smul.addr %s162, 8
          %s164 = scalar_lea.vmem [#allocation3], %s163
          %s166 = ssub.s32 128, 128
          %167 = vsyncadd %s161, %s166
          %s168 = smul.addr %s14, 128
          %s169 = scalar_lea.hbm %s0, %s168
          %s171 = sshll.u32 %s164, 4
          %s172 = int_to_ptr.vmem [resolvable:$true] %s171
          %174 = dma.hbm_to_vmem [thread:$0]  %s169, 128, %s172, %s161
        $region32: #{tpu_custom_call.1} parent=27 // pred_fallthru
          _
      $region28: #{tpu_custom_call.1} parent=5 // pred_fallthru
        _
      %p175 = scmp.le.s32.totalorder 1, %s14
      %p176 = scmp.lt.s32.totalorder %s14, 3
      %p177 = pnand %p175, %p176
      %p178 = pneg %p177
      // Predicated region
      $region33: #{tpu_custom_call.1} parent=5 // pred_check
        _
      $region34: #{tpu_custom_call.1} parent=5 // pred_check_branch
        %180 = sbr.rel (%p177) target = $region36
      $region35: #{tpu_custom_call.1} parent=5 // pred_region
        %s181 = ssub.s32 %s14, 1
        %s182 = sand.u32 %s27, 1
        %s183 = scalar_lea.sflag [#allocation4], %s182
        %s184 = sand.u32 %s27, 1
        %s185 = smul.addr %s184, 8
        %s186 = scalar_lea.vmem [#allocation3], %s185
        // Predicated region
        $region37: #{tpu_custom_call.1} parent=35 // pred_check
          %p187 = pneg %p40
        $region38: #{tpu_custom_call.1} parent=35 // pred_check_branch
          %189 = sbr.rel (%p187) target = $region40
        $region39: #{tpu_custom_call.1} parent=35 // pred_region
          %190 = dma.done %s183, 128
        $region40: #{tpu_custom_call.1} parent=35 // pred_fallthru
          _
        %s191 = sand.u32 %s27, 1
        %s192 = scalar_lea.sflag [#allocation4], %s191
        %s193 = sand.u32 %s27, 1
        %s194 = smul.addr %s193, 8
        %s195 = scalar_lea.vmem [#allocation3], %s194
        %p196 = pneg %p40
        %p197 = pneg %p37
        %p198 = pneg %p61
        %p199 = pneg %p58
        %p200 = pneg %p82
        %p201 = pneg %p79
        %p202 = pneg %p103
        %p203 = pneg %p100
        %p204 = pneg %p129
        %p205 = pneg %p126
        %p206 = scmp.lt.s32.totalorder %s19, 1
        %s207 = scalar_select %p206, %s19, 1
        %s208 = smul.addr %s207, 8
        %s209 = scalar_lea.vmem %s4, %s208
        %p210 = scmp.lt.s32.totalorder %s19, 1
        %s211 = scalar_select %p210, %s19, 1
        %s212 = smul.addr %s211, 8
        %s213 = scalar_lea.vmem %s4, %s212
        %v214 = vld [vmem:[%s186] sm:$0xff]
        %v215 = vld [vmem:[%s1] sm:$0x1]
        %v217 = vlaneseq
        %v218 = vshrl.u32 %v217, 7
        %v219 = vsub.s32 0, %v218
        %v220 = vrot.slane %v215, %v219
        %v222 = vsub.f32 %v214, %v220
        %v223 = vld [vmem:[%s2] sm:$0x1]
        %v225 = vlaneseq
        %v226 = vshrl.u32 %v225, 7
        %v227 = vsub.s32 0, %v226
        %v228 = vrot.slane %v223, %v227
        %v230 = vmul.f32 %v222, %v228
        %v231 = vmul.f32 %v230, %v230
        %vm232 = vcmask 261120
        %v233 = vsel %vm232, %v231, 0.0
        %234 = vadd.xlane.f32.xlu0 %v233
        %v235 = vpop.xlane.xlu0 %234
        %v236 = vmul.f32 %v235, -0.5
        %s237 = sld [smem:[#allocation2]]
        %v238 = vstv %s237
        %v239 = vadd.f32 %v236, %v238
        %vm240 = vcmask 7168
        %241 = vst.msk [vmem:[%s213] sm:$0xff] %vm240, %v239
        %p242 = scmp.lt.s32.totalorder %s19, 1
        %s243 = scalar_select %p242, %s19, 1
        %s244 = smul.addr %s243, 8
        %s245 = scalar_lea.vmem %s4, %s244
        // Predicated region
        $region41: #{tpu_custom_call.1} parent=35 // pred_check
          %p246 = pneg %p126
        $region42: #{tpu_custom_call.1} parent=35 // pred_check_branch
          %248 = sbr.rel (%p246) target = $region44
        $region43: #{tpu_custom_call.1} parent=35 // pred_region
          _
        $region44: #{tpu_custom_call.1} parent=35 // pred_fallthru
          _
      $region36: #{tpu_custom_call.1} parent=5 // pred_fallthru
        _
      %p249 = scmp.le.s32.totalorder 2, %s14
      // Predicated region
      $region45: #{tpu_custom_call.1} parent=5 // pred_check
        %p250 = pneg %p249
      $region46: #{tpu_custom_call.1} parent=5 // pred_check_branch
        %252 = sbr.rel (%p250) target = $region48
      $region47: #{tpu_custom_call.1} parent=5 // pred_region
        %s253 = ssub.s32 %s14, 2
        // Predicated region
        $region49: #{tpu_custom_call.1} parent=47 // pred_check
          %p254 = pneg %p132
        $region50: #{tpu_custom_call.1} parent=47 // pred_check_branch
          %256 = sbr.rel (%p254) target = $region52
        $region51: #{tpu_custom_call.1} parent=47 // pred_region
          %p257 = scmp.lt.s32.totalorder %s20, 1
          %s258 = scalar_select %p257, %s20, 1
          %s259 = smul.addr %s258, 8
          %s260 = scalar_lea.vmem %s4, %s259
        $region52: #{tpu_custom_call.1} parent=47 // pred_fallthru
          _
      $region48: #{tpu_custom_call.1} parent=5 // pred_fallthru
        _
    $region6: #{tpu_custom_call.1} parent=1 // loop_footer
      %s18 = sadd.s32 1, %s14
    $region7: #{tpu_custom_call.1} parent=1 // loop_footer_branch
      %13 = sbr.rel target = $region3
    $region8: #{tpu_custom_call.1} parent=1 // loop_exit
      _
    %261 = vsyncpa [#allocation4], 1
    %s262 = scalar_lea.sflag [#allocation4], 1
    %263 = vsyncpa %s262, 1

</llo_original>
